<compile_context>
chip_gen: v6e
topology: v6e:2x2x1
jax: 0.10.0
libtpu: 0.0.40
codegen_flags: <defaults>
</compile_context>

<pallas_src>
import numpy as np
import jax
import jax.numpy as jnp
from jax.experimental import pallas as pl
from jax.experimental.pallas import tpu as pltpu

BN_EPS = 1e-5
LANE = 128


def _transition_kernel(x_ref, scale_ref, shift_ref, w_ref, o_ref):
    # x_ref     : (1, 2*th, Wo, 2*Cin_p) bf16 -- NHWC slab with the horizontal
    #             pool pair interleaved into the lane dim.
    # scale/shift: (1, 2*Cin_p) f32 -- host-folded BatchNorm (inference),
    #             duplicated for the two horizontal pixels.
    # w_ref     : (Cin_p, Cout_p) bf16 -- 1x1 conv weight, 0.25 factor folded in.
    # o_ref     : (1, th, Wo, Cout_p) f32.
    _, two_th, wo, two_cin = x_ref.shape
    th = two_th // 2
    cin_p = two_cin // 2
    cout_p = o_ref.shape[-1]

    x = x_ref[0].astype(jnp.float32)                            # (2*th, Wo, 2*Cin_p)
    y = jnp.maximum(x * scale_ref[...] + shift_ref[...], 0.0)   # BN + ReLU (VPU, f32)

    # 2x2 average pool of relu(bn(x)); the 1/4 lives in w.
    y = y.reshape(th, 2, wo, two_cin)           # split vertical pairs (major dim, free)
    z = y[:, 0] + y[:, 1]                       # vertical sum       (th, Wo, 2*Cin_p)
    p = z[:, :, :cin_p] + z[:, :, cin_p:]       # horizontal sum, 128-aligned lane slices

    # 1x1 convolution == channel matmul on the MXU (bf16 operands, f32 accum).
    res = jnp.dot(p.reshape(th * wo, cin_p).astype(jnp.bfloat16), w_ref[...],
                  preferred_element_type=jnp.float32)
    o_ref[0] = res.reshape(th, wo, cout_p).astype(o_ref.dtype)


def _round_up(x, m):
    return ((x + m - 1) // m) * m


def _vmem_capacity_bytes():
    try:
        info = pltpu.get_tpu_info()
        cap = getattr(info, "vmem_capacity_bytes", None)
        if cap:
            return int(cap)
    except Exception:
        pass
    return 64 * 1024 * 1024   # conservative: v7x per-TensorCore physical VMEM


def _pick_tile_ho(Ho, Wo, Cin_p, Cout_p, budget_bytes, min_row_tiles,
                  max_pooled_rows=None):
    """Largest divisor t of Ho whose per-step VMEM footprint fits the budget,
    while keeping at least `min_row_tiles` row tiles.  Falls back to t=1
    (always legal: last-two block dims are full-extent, so no sublane rule)."""
    const = Cin_p * Cout_p * 2 + 4 * 2 * Cin_p * 4      # weight + scale/shift bufs

    def step_bytes(t):
        rows = t * Wo
        in_buf = 4 * rows * Cin_p * 2                    # (2t, Wo, 2Cin_p) bf16
        out_buf = rows * Cout_p * 4                      # (t, Wo, Cout_p) f32
        interm = rows * (30 * Cin_p + 4 * Cout_p)        # f32 temps (y, z, p, res)
        return 2 * in_buf + 2 * out_buf + interm + const

    best = 1
    for t in range(1, Ho + 1):
        if Ho % t:
            continue
        if Ho // t < min_row_tiles:
            continue
        if max_pooled_rows is not None and t * Wo > max_pooled_rows:
            continue
        if step_bytes(t) <= budget_bytes:
            best = t
    return best


def transition_block_forward(x_nchw, gamma, beta, run_mean, run_var, conv_w,
                             *, max_pooled_rows=None):
    """x_nchw: (N, Cin, H, W); conv_w: (Cout, Cin) (1x1 conv kernel squeezed).
    Returns (N, Cout, H//2, W//2) float32, matching the PyTorch NCHW interface.
    BatchNorm uses inference semantics (running stats + affine)."""
    # TODO(synk): training-mode BatchNorm (batch statistics + running-stat
    # updates) is not implemented; inference semantics only.
    N, Cin, H, W = x_nchw.shape
    Cout = conv_w.shape[0]
    Ho, Wo = H // 2, W // 2                 # AvgPool2d(2,2) floors odd spatial dims
    assert Ho > 0 and Wo > 0

    Cin_p = _round_up(Cin, LANE)
    Cout_p = _round_up(Cout, LANE)

    # --- layout glue (NCHW interface): one fused transpose+cast(+pad) pass ---
    # TODO(synk): in a full NHWC pipeline this transpose disappears entirely.
    x_nhwc = jnp.transpose(x_nchw, (0, 2, 3, 1))[:, :2 * Ho, :2 * Wo, :]
    if Cin_p != Cin:
        x_nhwc = jnp.pad(x_nhwc, ((0, 0), (0, 0), (0, 0), (0, Cin_p - Cin)))
    # (N, 2Ho, 2Wo, Cin_p) -> (N, 2Ho, Wo, 2*Cin_p): contiguous reshape (free);
    # interleaves the horizontal pool pair into the lane dimension.
    x_in = x_nhwc.astype(jnp.bfloat16).reshape(N, 2 * Ho, Wo, 2 * Cin_p)

    # --- fold BatchNorm (inference) into scale/shift; duplicate per pixel pair
    scale = gamma.astype(jnp.float32) * jax.lax.rsqrt(
        run_var.astype(jnp.float32) + BN_EPS)
    shift = beta.astype(jnp.float32) - run_mean.astype(jnp.float32) * scale
    scale_p = jnp.zeros((Cin_p,), jnp.float32).at[:Cin].set(scale)
    shift_p = jnp.zeros((Cin_p,), jnp.float32).at[:Cin].set(shift)
    scale2 = jnp.concatenate([scale_p, scale_p]).reshape(1, 2 * Cin_p)
    shift2 = jnp.concatenate([shift_p, shift_p]).reshape(1, 2 * Cin_p)

    # --- 1x1 conv weight (Cin_p, Cout_p) bf16; 0.25 pool factor folded in ----
    w = conv_w.astype(jnp.float32).T * 0.25
    w_p = jnp.zeros((Cin_p, Cout_p), jnp.float32).at[:Cin, :Cout].set(w)
    w_p = w_p.astype(jnp.bfloat16)

    # --- row-tile size from an explicit VMEM budget ---------------------------
    vmem_cap = _vmem_capacity_bytes()
    vmem_limit = min(int(vmem_cap * 0.85), 100 * 1024 * 1024)
    budget = int(vmem_limit * 0.6)
    min_row_tiles = 1 if N >= 2 else min(2, Ho)   # keep both v7x TCs busy
    tile_ho = _pick_tile_ho(Ho, Wo, Cin_p, Cout_p, budget, min_row_tiles,
                            max_pooled_rows)
    grid = (N, Ho // tile_ho)

    x_spec = pl.BlockSpec((1, 2 * tile_ho, Wo, 2 * Cin_p),
                          lambda n, r: (n, r, 0, 0))
    o_spec = pl.BlockSpec((1, tile_ho, Wo, Cout_p), lambda n, r: (n, r, 0, 0))

    cost = pl.CostEstimate(
        flops=2 * N * Ho * Wo * Cin_p * Cout_p + 8 * N * Ho * Wo * Cin_p,
        transcendentals=0,
        bytes_accessed=(x_in.size * 2 + N * Ho * Wo * Cout_p * 4
                        + Cin_p * Cout_p * 2 + 4 * Cin_p * 4),
    )

    def build(single_buffer_consts):
        pm = dict(pipeline_mode=pl.Buffered(1)) if single_buffer_consts else {}
        vec_spec = pl.BlockSpec((1, 2 * Cin_p), lambda n, r: (0, 0), **pm)
        w_spec = pl.BlockSpec((Cin_p, Cout_p), lambda n, r: (0, 0), **pm)
        return pl.pallas_call(
            _transition_kernel,
            out_shape=jax.ShapeDtypeStruct((N, Ho, Wo, Cout_p), jnp.float32),
            grid=grid,
            in_specs=[x_spec, vec_spec, vec_spec, w_spec],
            out_specs=o_spec,
            compiler_params=pltpu.CompilerParams(
                dimension_semantics=("parallel", "parallel"),
                vmem_limit_bytes=vmem_limit),
            cost_estimate=cost,
        )

    try:
        out4 = build(True)(x_in, scale2, shift2, w_p)
    except Exception:
        # pl.Buffered(1) on the constant operands is only a VMEM saving; fall
        # back to default double buffering if this jax build rejects it.
        out4 = build(False)(x_in, scale2, shift2, w_p)

    out = out4 if Cout_p == Cout else out4[..., :Cout]
    # NHWC -> NCHW glue to match the PyTorch interface.
    return jnp.transpose(out, (0, 3, 1, 2))


def _reference(x_nchw, gamma, beta, run_mean, run_var, conv_w):
    x = jnp.transpose(x_nchw, (0, 2, 3, 1)).astype(jnp.float32)       # NHWC
    y = (x - run_mean) * (gamma / jnp.sqrt(run_var + BN_EPS)) + beta
    y = jnp.maximum(y, 0.0)
    z = jnp.einsum("nhwc,oc->nhwo", y, conv_w.astype(jnp.float32))
    N, H, W, Cout = z.shape
    pooled = z.reshape(N, H // 2, 2, W // 2, 2, Cout).mean(axis=(2, 4))
    return pooled.transpose(0, 3, 1, 2)


if __name__ == "__main__":
    # Small shapes consistent with the module: batch=2, in_channels=4,
    # out_channels=8, spatial=16x16.
    N, Cin, Cout, H, W = 2, 4, 8, 16, 16

    key = jax.random.PRNGKey(0)
    kx, kw, kg, kb, km, kv = jax.random.split(key, 6)

    x = jax.random.normal(kx, (N, Cin, H, W), dtype=jnp.float32)
    conv_w = jax.random.normal(kw, (Cout, Cin), dtype=jnp.float32) * 0.1  # 1x1 conv
    gamma = 1.0 + 0.1 * jax.random.normal(kg, (Cin,), dtype=jnp.float32)
    beta = 0.1 * jax.random.normal(kb, (Cin,), dtype=jnp.float32)
    run_mean = 0.1 * jax.random.normal(km, (Cin,), dtype=jnp.float32)
    run_var = 1.0 + 0.2 * jax.random.uniform(kv, (Cin,), dtype=jnp.float32)

    # max_pooled_rows=32 -> 2 spatial row tiles at this toy size (exercises the
    # second grid axis); at real DenseNet sizes the VMEM-budget rule applies.
    out = transition_block_forward(x, gamma, beta, run_mean, run_var, conv_w,
                                   max_pooled_rows=32)
    out = jax.block_until_ready(out)

    ref = _reference(x, gamma, beta, run_mean, run_var, conv_w)
    assert out.shape == (N, Cout, H // 2, W // 2), out.shape
    # bf16 activation + matmul operands (f32 accumulation) -> loosened tolerance.
    np.testing.assert_allclose(np.asarray(out), np.asarray(ref),
                               rtol=2e-2, atol=2e-2)

    print("KERNEL_OK")
</pallas_src>

<mosaic_0001>
module attributes {stable_mosaic.version = 11 : i64} {
  func.func @_transition_kernel(%arg0: i32, %arg1: i32, %arg2: memref<1x8x8x256xbf16, #tpu.memory_space<vmem>>, %arg3: memref<1x256xf32, #tpu.memory_space<vmem>>, %arg4: memref<1x256xf32, #tpu.memory_space<vmem>>, %arg5: memref<128x128xbf16, #tpu.memory_space<vmem>>, %arg6: memref<1x4x8x128xf32, #tpu.memory_space<vmem>>) attributes {dimension_semantics = [#tpu.dimension_semantics<parallel>, #tpu.dimension_semantics<parallel>], iteration_bounds = array<i64: 2, 2>, scalar_prefetch = 0 : i64, scratch_operands = 0 : i64, tpu.core_type = #tpu.core_type<tc>, window_params = [{transform_indices = @transform_0, window_bounds = array<i64: 1, 8, 8, 256>}, {pipeline_mode = #tpu.pipeline_mode<synchronous>, transform_indices = @transform_1, window_bounds = array<i64: 1, 256>}, {pipeline_mode = #tpu.pipeline_mode<synchronous>, transform_indices = @transform_2, window_bounds = array<i64: 1, 256>}, {pipeline_mode = #tpu.pipeline_mode<synchronous>, transform_indices = @transform_3, window_bounds = array<i64: 128, 128>}, {transform_indices = @transform_4, window_bounds = array<i64: 1, 4, 8, 128>}]} {
    %c0 = arith.constant 0 : index
    %c0_0 = arith.constant 0 : index
    %c0_1 = arith.constant 0 : index
    %c0_2 = arith.constant 0 : index
    %0 = vector.load %arg2[%c0, %c0_0, %c0_1, %c0_2] : memref<1x8x8x256xbf16, #tpu.memory_space<vmem>>, vector<1x8x8x256xbf16>
    %1 = vector.shape_cast %0 : vector<1x8x8x256xbf16> to vector<8x8x256xbf16>
    %2 = arith.extf %1 : vector<8x8x256xbf16> to vector<8x8x256xf32>
    %c0_3 = arith.constant 0 : index
    %c0_4 = arith.constant 0 : index
    %3 = vector.load %arg3[%c0_3, %c0_4] : memref<1x256xf32, #tpu.memory_space<vmem>>, vector<1x256xf32>
    %4 = vector.shape_cast %3 : vector<1x256xf32> to vector<1x1x256xf32>
    %5 = vector.broadcast %4 : vector<1x1x256xf32> to vector<8x8x256xf32>
    %6 = arith.mulf %2, %5 : vector<8x8x256xf32>
    %c0_5 = arith.constant 0 : index
    %c0_6 = arith.constant 0 : index
    %7 = vector.load %arg4[%c0_5, %c0_6] : memref<1x256xf32, #tpu.memory_space<vmem>>, vector<1x256xf32>
    %8 = vector.shape_cast %7 : vector<1x256xf32> to vector<1x1x256xf32>
    %9 = vector.broadcast %8 : vector<1x1x256xf32> to vector<8x8x256xf32>
    %10 = arith.addf %6, %9 : vector<8x8x256xf32>
    %cst = arith.constant 0.000000e+00 : f32
    %11 = vector.broadcast %cst : f32 to vector<8x8x256xf32>
    %12 = arith.maximumf %10, %11 : vector<8x8x256xf32>
    %13 = vector.shape_cast %12 : vector<8x8x256xf32> to vector<4x2x8x256xf32>
    %14 = vector.extract_strided_slice %13 {offsets = [0, 0, 0, 0], sizes = [4, 1, 8, 256], strides = [1, 1, 1, 1]} : vector<4x2x8x256xf32> to vector<4x1x8x256xf32>
    %15 = vector.shape_cast %14 : vector<4x1x8x256xf32> to vector<4x8x256xf32>
    %16 = vector.extract_strided_slice %13 {offsets = [0, 1, 0, 0], sizes = [4, 1, 8, 256], strides = [1, 1, 1, 1]} : vector<4x2x8x256xf32> to vector<4x1x8x256xf32>
    %17 = vector.shape_cast %16 : vector<4x1x8x256xf32> to vector<4x8x256xf32>
    %18 = arith.addf %15, %17 : vector<4x8x256xf32>
    %19 = vector.extract_strided_slice %18 {offsets = [0, 0, 0], sizes = [4, 8, 128], strides = [1, 1, 1]} : vector<4x8x256xf32> to vector<4x8x128xf32>
    %20 = vector.extract_strided_slice %18 {offsets = [0, 0, 128], sizes = [4, 8, 128], strides = [1, 1, 1]} : vector<4x8x256xf32> to vector<4x8x128xf32>
    %21 = arith.addf %19, %20 : vector<4x8x128xf32>
    %22 = vector.shape_cast %21 : vector<4x8x128xf32> to vector<32x128xf32>
    %23 = arith.truncf %22 : vector<32x128xf32> to vector<32x128xbf16>
    %c0_7 = arith.constant 0 : index
    %c0_8 = arith.constant 0 : index
    %24 = vector.load %arg5[%c0_7, %c0_8] : memref<128x128xbf16, #tpu.memory_space<vmem>>, vector<128x128xbf16>
    %cst_9 = arith.constant dense<0.000000e+00> : vector<32x128xf32>
    %25 = tpu.matmul %23, %24, %cst_9 {dimension_numbers = #tpu.dot_dimension_numbers<[1], [0], [0], [1], [0, 0, 1, 1], [], []>} : vector<32x128xbf16>, vector<128x128xbf16>, vector<32x128xf32> -> vector<32x128xf32>
    %26 = vector.shape_cast %25 : vector<32x128xf32> to vector<4x8x128xf32>
    %c0_10 = arith.constant 0 : index
    %c0_11 = arith.constant 0 : index
    %c0_12 = arith.constant 0 : index
    %c0_13 = arith.constant 0 : index
    %27 = vector.load %arg6[%c0_10, %c0_11, %c0_12, %c0_13] : memref<1x4x8x128xf32, #tpu.memory_space<vmem>>, vector<1x4x8x128xf32>
    %28 = vector.shape_cast %27 : vector<1x4x8x128xf32> to vector<4x8x128xf32>
    %29 = vector.shape_cast %26 : vector<4x8x128xf32> to vector<1x4x8x128xf32>
    tpu.vector_store %arg6[%c0_10, %c0_11, %c0_12, %c0_13], %29 {strides = array<i32>} : memref<1x4x8x128xf32, #tpu.memory_space<vmem>>, vector<1x4x8x128xf32>,
    return
  }
  func.func @transform_0(%arg0: i32, %arg1: i32) -> (i32, i32, i32, i32) {
    %c0_i32 = arith.constant 0 : i32
    %c0_i32_0 = arith.constant 0 : i32
    %c0_i32_1 = arith.constant 0 : i32
    return %arg0, %arg1, %c0_i32, %c0_i32_0 : i32, i32, i32, i32
  }
  func.func @transform_1(%arg0: i32, %arg1: i32) -> (i32, i32) {
    %c0_i32 = arith.constant 0 : i32
    %c0_i32_0 = arith.constant 0 : i32
    %c0_i32_1 = arith.constant 0 : i32
    return %c0_i32, %c0_i32_0 : i32, i32
  }
  func.func @transform_2(%arg0: i32, %arg1: i32) -> (i32, i32) {
    %c0_i32 = arith.constant 0 : i32
    %c0_i32_0 = arith.constant 0 : i32
    %c0_i32_1 = arith.constant 0 : i32
    return %c0_i32, %c0_i32_0 : i32, i32
  }
  func.func @transform_3(%arg0: i32, %arg1: i32) -> (i32, i32) {
    %c0_i32 = arith.constant 0 : i32
    %c0_i32_0 = arith.constant 0 : i32
    %c0_i32_1 = arith.constant 0 : i32
    return %c0_i32, %c0_i32_0 : i32, i32
  }
  func.func @transform_4(%arg0: i32, %arg1: i32) -> (i32, i32, i32, i32) {
    %c0_i32 = arith.constant 0 : i32
    %c0_i32_0 = arith.constant 0 : i32
    %c0_i32_1 = arith.constant 0 : i32
    return %arg0, %arg1, %c0_i32, %c0_i32_0 : i32, i32, i32, i32
  }
}

module attributes {stable_mosaic.version = 11 : i64} {
  func.func @_transition_kernel(%arg0: i32, %arg1: i32, %arg2: memref<1x8x8x256xbf16, #tpu.memory_space<vmem>>, %arg3: memref<1x256xf32, #tpu.memory_space<vmem>>, %arg4: memref<1x256xf32, #tpu.memory_space<vmem>>, %arg5: memref<128x128xbf16, #tpu.memory_space<vmem>>, %arg6: memref<1x4x8x128xf32, #tpu.memory_space<vmem>>) attributes {dimension_semantics = [#tpu.dimension_semantics<parallel>, #tpu.dimension_semantics<parallel>], iteration_bounds = array<i64: 2, 2>, scalar_prefetch = 0 : i64, scratch_operands = 0 : i64, tpu.core_type = #tpu.core_type<tc>, window_params = [{transform_indices = @transform_0, window_bounds = array<i64: 1, 8, 8, 256>}, {pipeline_mode = #tpu.pipeline_mode<synchronous>, transform_indices = @transform_1, window_bounds = array<i64: 1, 256>}, {pipeline_mode = #tpu.pipeline_mode<synchronous>, transform_indices = @transform_2, window_bounds = array<i64: 1, 256>}, {pipeline_mode = #tpu.pipeline_mode<synchronous>, transform_indices = @transform_3, window_bounds = array<i64: 128, 128>}, {transform_indices = @transform_4, window_bounds = array<i64: 1, 4, 8, 128>}]} {
    %c0 = arith.constant 0 : index
    %c0_0 = arith.constant 0 : index
    %c0_1 = arith.constant 0 : index
    %c0_2 = arith.constant 0 : index
    %0 = vector.load %arg2[%c0, %c0_0, %c0_1, %c0_2] : memref<1x8x8x256xbf16, #tpu.memory_space<vmem>>, vector<1x8x8x256xbf16>
    %1 = vector.shape_cast %0 : vector<1x8x8x256xbf16> to vector<8x8x256xbf16>
    %2 = arith.extf %1 : vector<8x8x256xbf16> to vector<8x8x256xf32>
    %c0_3 = arith.constant 0 : index
    %c0_4 = arith.constant 0 : index
    %3 = vector.load %arg3[%c0_3, %c0_4] : memref<1x256xf32, #tpu.memory_space<vmem>>, vector<1x256xf32>
    %4 = vector.shape_cast %3 : vector<1x256xf32> to vector<1x1x256xf32>
    %5 = vector.broadcast %4 : vector<1x1x256xf32> to vector<8x8x256xf32>
    %6 = arith.mulf %2, %5 : vector<8x8x256xf32>
    %c0_5 = arith.constant 0 : index
    %c0_6 = arith.constant 0 : index
    %7 = vector.load %arg4[%c0_5, %c0_6] : memref<1x256xf32, #tpu.memory_space<vmem>>, vector<1x256xf32>
    %8 = vector.shape_cast %7 : vector<1x256xf32> to vector<1x1x256xf32>
    %9 = vector.broadcast %8 : vector<1x1x256xf32> to vector<8x8x256xf32>
    %10 = arith.addf %6, %9 : vector<8x8x256xf32>
    %cst = arith.constant 0.000000e+00 : f32
    %11 = vector.broadcast %cst : f32 to vector<8x8x256xf32>
    %12 = arith.maximumf %10, %11 : vector<8x8x256xf32>
    %13 = vector.shape_cast %12 : vector<8x8x256xf32> to vector<4x2x8x256xf32>
    %14 = vector.extract_strided_slice %13 {offsets = [0, 0, 0, 0], sizes = [4, 1, 8, 256], strides = [1, 1, 1, 1]} : vector<4x2x8x256xf32> to vector<4x1x8x256xf32>
    %15 = vector.shape_cast %14 : vector<4x1x8x256xf32> to vector<4x8x256xf32>
    %16 = vector.extract_strided_slice %13 {offsets = [0, 1, 0, 0], sizes = [4, 1, 8, 256], strides = [1, 1, 1, 1]} : vector<4x2x8x256xf32> to vector<4x1x8x256xf32>
    %17 = vector.shape_cast %16 : vector<4x1x8x256xf32> to vector<4x8x256xf32>
    %18 = arith.addf %15, %17 : vector<4x8x256xf32>
    %19 = vector.extract_strided_slice %18 {offsets = [0, 0, 0], sizes = [4, 8, 128], strides = [1, 1, 1]} : vector<4x8x256xf32> to vector<4x8x128xf32>
    %20 = vector.extract_strided_slice %18 {offsets = [0, 0, 128], sizes = [4, 8, 128], strides = [1, 1, 1]} : vector<4x8x256xf32> to vector<4x8x128xf32>
    %21 = arith.addf %19, %20 : vector<4x8x128xf32>
    %22 = vector.shape_cast %21 : vector<4x8x128xf32> to vector<32x128xf32>
    %23 = arith.truncf %22 : vector<32x128xf32> to vector<32x128xbf16>
    %c0_7 = arith.constant 0 : index
    %c0_8 = arith.constant 0 : index
    %24 = vector.load %arg5[%c0_7, %c0_8] : memref<128x128xbf16, #tpu.memory_space<vmem>>, vector<128x128xbf16>
    %cst_9 = arith.constant dense<0.000000e+00> : vector<32x128xf32>
    %25 = tpu.matmul %23, %24, %cst_9 {dimension_numbers = #tpu.dot_dimension_numbers<[1], [0], [0], [1], [0, 0, 1, 1], [], []>} : vector<32x128xbf16>, vector<128x128xbf16>, vector<32x128xf32> -> vector<32x128xf32>
    %26 = vector.shape_cast %25 : vector<32x128xf32> to vector<4x8x128xf32>
    %c0_10 = arith.constant 0 : index
    %c0_11 = arith.constant 0 : index
    %c0_12 = arith.constant 0 : index
    %c0_13 = arith.constant 0 : index
    %27 = vector.load %arg6[%c0_10, %c0_11, %c0_12, %c0_13] : memref<1x4x8x128xf32, #tpu.memory_space<vmem>>, vector<1x4x8x128xf32>
    %28 = vector.shape_cast %27 : vector<1x4x8x128xf32> to vector<4x8x128xf32>
    %29 = vector.shape_cast %26 : vector<4x8x128xf32> to vector<1x4x8x128xf32>
    tpu.vector_store %arg6[%c0_10, %c0_11, %c0_12, %c0_13], %29 {strides = array<i32>} : memref<1x4x8x128xf32, #tpu.memory_space<vmem>>, vector<1x4x8x128xf32>,
    return
  }
  func.func @transform_0(%arg0: i32, %arg1: i32) -> (i32, i32, i32, i32) {
    %c0_i32 = arith.constant 0 : i32
    %c0_i32_0 = arith.constant 0 : i32
    %c0_i32_1 = arith.constant 0 : i32
    return %arg0, %arg1, %c0_i32, %c0_i32_0 : i32, i32, i32, i32
  }
  func.func @transform_1(%arg0: i32, %arg1: i32) -> (i32, i32) {
    %c0_i32 = arith.constant 0 : i32
    %c0_i32_0 = arith.constant 0 : i32
    %c0_i32_1 = arith.constant 0 : i32
    return %c0_i32, %c0_i32_0 : i32, i32
  }
  func.func @transform_2(%arg0: i32, %arg1: i32) -> (i32, i32) {
    %c0_i32 = arith.constant 0 : i32
    %c0_i32_0 = arith.constant 0 : i32
    %c0_i32_1 = arith.constant 0 : i32
    return %c0_i32, %c0_i32_0 : i32, i32
  }
  func.func @transform_3(%arg0: i32, %arg1: i32) -> (i32, i32) {
    %c0_i32 = arith.constant 0 : i32
    %c0_i32_0 = arith.constant 0 : i32
    %c0_i32_1 = arith.constant 0 : i32
    return %c0_i32, %c0_i32_0 : i32, i32
  }
  func.func @transform_4(%arg0: i32, %arg1: i32) -> (i32, i32, i32, i32) {
    %c0_i32 = arith.constant 0 : i32
    %c0_i32_0 = arith.constant 0 : i32
    %c0_i32_1 = arith.constant 0 : i32
    return %arg0, %arg1, %c0_i32, %c0_i32_0 : i32, i32, i32, i32
  }
}

</mosaic_0001>

<llo_original>
// kernel: tpu_custom_call.1
$region0: #{tpu_custom_call.1}
  #allocation0 [shape = 'u32[]', space=smem, size = 0x4, offset = 0x4, fixed_abs, tag = 'smem constant byte address 0x4 - core index']
  #allocation1 [shape = 'u32[144,128]{1,0:T(1,128)}', space=vmem, size = 0x12000, scoped, tag = 'internal scratch']
  %s0 = inlined_call_operand.hbm [shape: bf16[2,16,8,256], index: 0, kind: input, shape index: {}]
  %s1 = inlined_call_operand.hbm [shape: f32[1,256], index: 1, kind: input, shape index: {}]
  %s2 = inlined_call_operand.vmem [shape: f32[1,256], index: 2, kind: input, shape index: {}]
  %s3 = inlined_call_operand.hbm [shape: bf16[128,128], index: 3, kind: input, shape index: {}]
  %s4 = inlined_call_operand.hbm [shape: f32[2,8,8,128], index: 4, kind: output, shape index: {}]
  %s5 = sld [smem:[#allocation0]]
  $region61: #{tpu_custom_call.1} parent=0
    _
  %s7 = ssub.s32 1, %s5
  %s8 = scalar_select 0, %s7, %s5
  $region1: #{tpu_custom_call.1} parent=0
    #allocation2 [shape = 'u8[65536]{0}', space=vmem, size = 0x10000, scoped, tag = 'input window, operand 0']
    #allocation3 [shape = 's32[2]{0}', space=sflag, size = 0x8, scoped, tag = 'scoped memory for tpu_custom_call.1']
    #allocation4 [shape = 's32[2]{0}', space=sflag, size = 0x8, scoped, tag = 'scoped memory for tpu_custom_call.1']
    #allocation5 [shape = 'u8[1024]{0}', space=vmem, size = 0x400, scoped, tag = 'input window, operand 1, single buffered']
    #allocation6 [shape = 's32[1]{0}', space=sflag, size = 0x4, scoped, tag = 'scoped memory for tpu_custom_call.1']
    #allocation7 [shape = 'u8[32768]{0}', space=vmem, size = 0x8000, scoped, tag = 'input window, operand 3, single buffered']
    #allocation8 [shape = 'u8[32768]{0}', space=vmem, size = 0x8000, scoped, tag = 'output window, operand 0']
    %9 = vsyncpa [#allocation3], 0
    %s10 = scalar_lea.sflag [#allocation3], 1
    %11 = vsyncpa %s10, 0
    %12 = vsyncpa [#allocation6], 0
    %13 = vsyncpa [#allocation4], 0
    %s14 = scalar_lea.sflag [#allocation4], 1
    %15 = vsyncpa %s14, 0
    loop: start=0, step=1, limit=6
    $region2: #{tpu_custom_call.1} parent=1 // loop_pre_header
      _
    $region3: #{tpu_custom_call.1} parent=1 // loop_header
      %s17 = sphi 0, %s21
      %p18 = scmp.ge.s32.totalorder %s17, 6
      %s24 = sphi 0, %s36
      %s25 = sphi 0, %s32
      %s26 = sphi 0, %s24
      %s27 = sphi 0, %s25
      %s28 = sphi 0, %s26
      %s29 = sphi 0, %s27
      %s41 = sphi 0, %s43
      %s44 = sphi 0, %s41
      %s45 = sphi 0, %s44
      %s61 = sphi 0, %s45
      %s65 = sphi 0, %s65
      %s67 = sphi 0, %s65
      %s68 = sphi 0, %s67
      %s82 = sphi 0, %s68
      %s86 = sphi 0, %s86
      %s88 = sphi 0, %s86
      %s89 = sphi 0, %s88
      %s103 = sphi 0, %s89
      %s107 = sphi 0, %s107
      %s109 = sphi 0, %s107
      %s110 = sphi 0, %s109
      %s124 = sphi 0, %s110
      %s132 = sphi 0, %s134
      %s135 = sphi 0, %s132
      %s136 = sphi 0, %s135
      %s152 = sphi 0, %s136
    $region4: #{tpu_custom_call.1} parent=1 // loop_header_branch
      %20 = sbr.rel (%p18) target = $region8
    $region5: #{tpu_custom_call.1} parent=1 // loop_body
      %s22 = ssub.s32 %s17, 1
      %s23 = ssub.s32 %s17, 2
      %s30 = sadd.s32 1, %s25
      %p31 = scmp.ge.s32.totalorder %s30, 2
      %s32 = scalar_select %p31, 0, %s30
      %s33 = sadd.s32 1, %s24
      %s34 = scalar_select %p31, %s33, %s24
      %p35 = scmp.ge.s32.totalorder %s34, 2
      %s36 = scalar_select %p35, 0, %s34
      %s37 = ssub.s32 %s24, %s36
      %s38 = ssub.s32 %s25, %s32
      %s39 = sor.u32 %s37, %s38
      %p40 = scmp.eq.s32.totalorder %s39, 0
      %s42 = sadd.s32 %s41, 1
      %s43 = scalar_select %p40, %s41, %s42
      %p46 = pneg %p40
      %p47 = scmp.eq.s32.totalorder %s17, 3
      %p48 = por %p46, %p47
      %p49 = scmp.ne.s32.totalorder %s41, %s44
      %p50 = scmp.eq.s32.totalorder %s17, 0
      %p51 = por %p49, %p50
      %p52 = scmp.ne.s32.totalorder %s41, %s44
      %p53 = scmp.eq.s32.totalorder %s22, 3
      %p54 = por %p52, %p53
      %p55 = scmp.ne.s32.totalorder %s44, %s45
      %p56 = scmp.eq.s32.totalorder %s22, 0
      %p57 = por %p55, %p56
      %p58 = scmp.ne.s32.totalorder %s44, %s45
      %p59 = scmp.eq.s32.totalorder %s23, 3
      %p60 = por %p58, %p59
      %p62 = scmp.ne.s32.totalorder %s45, %s61
      %p63 = scmp.eq.s32.totalorder %s23, 0
      %p64 = por %p62, %p63
      %s66 = sadd.s32 %s65, 1
      %p69 = scmp.eq.s32.totalorder %s17, 3
      %p70 = scmp.ne.s32.totalorder %s65, %s67
      %p71 = scmp.eq.s32.totalorder %s17, 0
      %p72 = por %p70, %p71
      %p73 = scmp.ne.s32.totalorder %s65, %s67
      %p74 = scmp.eq.s32.totalorder %s22, 3
      %p75 = por %p73, %p74
      %p76 = scmp.ne.s32.totalorder %s67, %s68
      %p77 = scmp.eq.s32.totalorder %s22, 0
      %p78 = por %p76, %p77
      %p79 = scmp.ne.s32.totalorder %s67, %s68
      %p80 = scmp.eq.s32.totalorder %s23, 3
      %p81 = por %p79, %p80
      %p83 = scmp.ne.s32.totalorder %s68, %s82
      %p84 = scmp.eq.s32.totalorder %s23, 0
      %p85 = por %p83, %p84
      %s87 = sadd.s32 %s86, 1
      %p90 = scmp.eq.s32.totalorder %s17, 3
      %p91 = scmp.ne.s32.totalorder %s86, %s88
      %p92 = scmp.eq.s32.totalorder %s17, 0
      %p93 = por %p91, %p92
      %p94 = scmp.ne.s32.totalorder %s86, %s88
      %p95 = scmp.eq.s32.totalorder %s22, 3
      %p96 = por %p94, %p95
      %p97 = scmp.ne.s32.totalorder %s88, %s89
      %p98 = scmp.eq.s32.totalorder %s22, 0
      %p99 = por %p97, %p98
      %p100 = scmp.ne.s32.totalorder %s88, %s89
      %p101 = scmp.eq.s32.totalorder %s23, 3
      %p102 = por %p100, %p101
      %p104 = scmp.ne.s32.totalorder %s89, %s103
      %p105 = scmp.eq.s32.totalorder %s23, 0
      %p106 = por %p104, %p105
      %s108 = sadd.s32 %s107, 1
      %p111 = scmp.eq.s32.totalorder %s17, 3
      %p112 = scmp.ne.s32.totalorder %s107, %s109
      %p113 = scmp.eq.s32.totalorder %s17, 0
      %p114 = por %p112, %p113
      %p115 = scmp.ne.s32.totalorder %s107, %s109
      %p116 = scmp.eq.s32.totalorder %s22, 3
      %p117 = por %p115, %p116
      %p118 = scmp.ne.s32.totalorder %s109, %s110
      %p119 = scmp.eq.s32.totalorder %s22, 0
      %p120 = por %p118, %p119
      %p121 = scmp.ne.s32.totalorder %s109, %s110
      %p122 = scmp.eq.s32.totalorder %s23, 3
      %p123 = por %p121, %p122
      %p125 = scmp.ne.s32.totalorder %s110, %s124
      %p126 = scmp.eq.s32.totalorder %s23, 0
      %p127 = por %p125, %p126
      %s128 = ssub.s32 %s24, %s36
      %s129 = ssub.s32 %s25, %s32
      %s130 = sor.u32 %s128, %s129
      %p131 = scmp.eq.s32.totalorder %s130, 0
      %s133 = sadd.s32 %s132, 1
      %s134 = scalar_select %p131, %s132, %s133
      %p137 = pneg %p131
      %p138 = scmp.eq.s32.totalorder %s17, 3
      %p139 = por %p137, %p138
      %p140 = scmp.ne.s32.totalorder %s132, %s135
      %p141 = scmp.eq.s32.totalorder %s17, 0
      %p142 = por %p140, %p141
      %p143 = scmp.ne.s32.totalorder %s132, %s135
      %p144 = scmp.eq.s32.totalorder %s22, 3
      %p145 = por %p143, %p144
      %p146 = scmp.ne.s32.totalorder %s135, %s136
      %p147 = scmp.eq.s32.totalorder %s22, 0
      %p148 = por %p146, %p147
      %p149 = scmp.ne.s32.totalorder %s135, %s136
      %p150 = scmp.eq.s32.totalorder %s23, 3
      %p151 = por %p149, %p150
      %p153 = scmp.ne.s32.totalorder %s136, %s152
      %p154 = scmp.eq.s32.totalorder %s23, 0
      %p155 = por %p153, %p154
      %p156 = scmp.le.s32.totalorder 1, %s17
      %p157 = scmp.lt.s32.totalorder %s17, 5
      %p158 = pnand %p156, %p157
      %p159 = pneg %p158
      // Predicated region
      $region9: #{tpu_custom_call.1} parent=5 // pred_check
        _
      $region10: #{tpu_custom_call.1} parent=5 // pred_check_branch
        %161 = sbr.rel (%p158) target = $region12
      $region11: #{tpu_custom_call.1} parent=5 // pred_region
        %s162 = ssub.s32 %s17, 1
        // Predicated region
        $region13: #{tpu_custom_call.1} parent=11 // pred_check
          %p163 = pneg %p78
        $region14: #{tpu_custom_call.1} parent=11 // pred_check_branch
          %165 = sbr.rel (%p163) target = $region16
        $region15: #{tpu_custom_call.1} parent=11 // pred_region
          %s167 = ssub.s32 32, 32
          %168 = vsyncadd [#allocation6], %s167
          %s170 = sshll.u32 [#allocation5], 4
          %s171 = int_to_ptr.vmem [resolvable:$true] %s170
          %173 = dma.hbm_to_vmem [thread:$0]  %s1, 32, %s171, [#allocation6]
        $region16: #{tpu_custom_call.1} parent=11 // pred_fallthru
          _
        // Predicated region
        $region17: #{tpu_custom_call.1} parent=11 // pred_check
          %p174 = pneg %p99
        $region18: #{tpu_custom_call.1} parent=11 // pred_check_branch
          %176 = sbr.rel (%p174) target = $region20
        $region19: #{tpu_custom_call.1} parent=11 // pred_region
          _
        $region20: #{tpu_custom_call.1} parent=11 // pred_fallthru
          _
        // Predicated region
        $region21: #{tpu_custom_call.1} parent=11 // pred_check
          %p177 = pneg %p120
        $region22: #{tpu_custom_call.1} parent=11 // pred_check_branch
          %179 = sbr.rel (%p177) target = $region24
        $region23: #{tpu_custom_call.1} parent=11 // pred_region
          %s181 = ssub.s32 1024, 1024
          %182 = vsyncadd [#allocation6], %s181
          %s183 = sshll.u32 [#allocation7], 4
          %s184 = int_to_ptr.vmem [resolvable:$true] %s183
          %189 = dma.hbm_to_vmem [thread:$0]  %s3, 1024, %s184, [#allocation6], 64, 64, 4
        $region24: #{tpu_custom_call.1} parent=11 // pred_fallthru
          _
      $region12: #{tpu_custom_call.1} parent=5 // pred_fallthru
        _
      %p190 = scmp.lt.s32.totalorder %s17, 4
      // Predicated region
      $region25: #{tpu_custom_call.1} parent=5 // pred_check
        %p191 = pneg %p190
      $region26: #{tpu_custom_call.1} parent=5 // pred_check_branch
        %193 = sbr.rel (%p191) target = $region28
      $region27: #{tpu_custom_call.1} parent=5 // pred_region
        // Predicated region
        $region29: #{tpu_custom_call.1} parent=27 // pred_check
          %p194 = pneg %p51
        $region30: #{tpu_custom_call.1} parent=27 // pred_check_branch
          %196 = sbr.rel (%p194) target = $region32
        $region31: #{tpu_custom_call.1} parent=27 // pred_region
          %s197 = sand.u32 %s41, 1
          %s198 = scalar_lea.sflag [#allocation3], %s197
          %s199 = sand.u32 %s41, 1
          %s200 = smul.addr %s199, 64
          %s201 = scalar_lea.vmem [#allocation2], %s200
          %s202 = smul.u32 8, %s25
          %s204 = ssub.s32 1024, 1024
          %205 = vsyncadd %s198, %s204
          %s206 = smul.addr %s202, 2
          %s207 = smul.addr %s24, 32
          %s208 = sadd.s32 %s206, %s207
          %s209 = smul.addr %s208, 64
          %s210 = scalar_lea.hbm %s0, %s209
          %s211 = sshll.u32 %s201, 4
          %s212 = int_to_ptr.vmem [resolvable:$true] %s211
          %217 = dma.hbm_to_vmem [thread:$0]  %s210, 1024, %s212, %s198, 128, 128, 8
        $region32: #{tpu_custom_call.1} parent=27 // pred_fallthru
          _
      $region28: #{tpu_custom_call.1} parent=5 // pred_fallthru
        _
      %p218 = scmp.le.s32.totalorder 1, %s17
      %p219 = scmp.lt.s32.totalorder %s17, 5
      %p220 = pnand %p218, %p219
      %p221 = pneg %p220
      // Predicated region
      $region33: #{tpu_custom_call.1} parent=5 // pred_check
        _
      $region34: #{tpu_custom_call.1} parent=5 // pred_check_branch
        %223 = sbr.rel (%p220) target = $region36
      $region35: #{tpu_custom_call.1} parent=5 // pred_region
        %s224 = ssub.s32 %s17, 1
        %s225 = sand.u32 %s44, 1
        %s226 = scalar_lea.sflag [#allocation3], %s225
        %s227 = sand.u32 %s44, 1
        %s228 = smul.addr %s227, 64
        %s229 = scalar_lea.vmem [#allocation2], %s228
        // Predicated region
        $region37: #{tpu_custom_call.1} parent=35 // pred_check
          %p230 = pneg %p57
        $region38: #{tpu_custom_call.1} parent=35 // pred_check_branch
          %232 = sbr.rel (%p230) target = $region40
        $region39: #{tpu_custom_call.1} parent=35 // pred_region
          %233 = dma.done %s226, 1024
        $region40: #{tpu_custom_call.1} parent=35 // pred_fallthru
          _
        // Predicated region
        $region41: #{tpu_custom_call.1} parent=35 // pred_check
          %p234 = pneg %p78
        $region42: #{tpu_custom_call.1} parent=35 // pred_check_branch
          %236 = sbr.rel (%p234) target = $region44
        $region43: #{tpu_custom_call.1} parent=35 // pred_region
          %237 = dma.done [#allocation6], 32
        $region44: #{tpu_custom_call.1} parent=35 // pred_fallthru
          _
        // Predicated region
        $region45: #{tpu_custom_call.1} parent=35 // pred_check
          %p238 = pneg %p120
        $region46: #{tpu_custom_call.1} parent=35 // pred_check_branch
          %240 = sbr.rel (%p238) target = $region48
        $region47: #{tpu_custom_call.1} parent=35 // pred_region
          %241 = dma.done [#allocation6], 1024
        $region48: #{tpu_custom_call.1} parent=35 // pred_fallthru
          _
        %s242 = sand.u32 %s44, 1
        %s243 = scalar_lea.sflag [#allocation3], %s242
        %s244 = sand.u32 %s44, 1
        %s245 = smul.addr %s244, 64
        %s246 = scalar_lea.vmem [#allocation2], %s245
        %p247 = pneg %p57
        %p248 = pneg %p54
        %p249 = pneg %p78
        %p250 = pneg %p75
        %p251 = pneg %p99
        %p252 = pneg %p96
        %p253 = pneg %p120
        %p254 = pneg %p117
        %p255 = pneg %p148
        %p256 = pneg %p145
        %s257 = sand.u32 %s135, 1
        %s258 = scalar_lea.sflag [#allocation4], %s257
        %s259 = sand.u32 %s135, 1
        %s260 = smul.addr %s259, 32
        %s261 = scalar_lea.vmem [#allocation8], %s260
        %s262 = smul.u32 8, %s27
        %s263 = smul.u32 4, %s27
        %v265 = vld [vmem:[%s229] sm:$0xff]
        %v266 = vld [vmem:[%s229 + $0x8] sm:$0xff]
        %v267 = vld [vmem:[%s229 + $0x10] sm:$0xff]
        %v268 = vld [vmem:[%s229 + $0x18] sm:$0xff]
        %v269 = vld [vmem:[%s229 + $0x20] sm:$0xff]
        %v270 = vld [vmem:[%s229 + $0x28] sm:$0xff]
        %v271 = vld [vmem:[%s229 + $0x30] sm:$0xff]
        %v272 = vld [vmem:[%s229 + $0x38] sm:$0xff]
        %v273 = vunpack.c.l.bf16 %v265
        %v274 = vunpack.c.h.bf16 %v265
        %v275 = vunpack.c.l.bf16 %v266
        %v276 = vunpack.c.h.bf16 %v266
        %v277 = vunpack.c.l.bf16 %v267
        %v278 = vunpack.c.h.bf16 %v267
        %v279 = vunpack.c.l.bf16 %v268
        %v280 = vunpack.c.h.bf16 %v268
        %v281 = vunpack.c.l.bf16 %v269
        %v282 = vunpack.c.h.bf16 %v269
        %v283 = vunpack.c.l.bf16 %v270
        %v284 = vunpack.c.h.bf16 %v270
        %v285 = vunpack.c.l.bf16 %v271
        %v286 = vunpack.c.h.bf16 %v271
        %v287 = vunpack.c.l.bf16 %v272
        %v288 = vunpack.c.h.bf16 %v272
        %v289 = vld [vmem:[#allocation5] sm:$0x3]
        %v291 = vlaneseq
        %v292 = vshrl.u32 %v291, 7
        %v293 = vsub.s32 0, %v292
        %v294 = vrot.slane %v289, %v293
        %v295 = vlaneseq
        %v296 = vshrl.u32 %v295, 7
        %v297 = vsub.s32 1, %v296
        %v298 = vrot.slane %v289, %v297
        %v301 = vmul.f32 %v273, %v294
        %v302 = vmul.f32 %v274, %v298
        %v303 = vmul.f32 %v275, %v294
        %v304 = vmul.f32 %v276, %v298
        %v305 = vmul.f32 %v277, %v294
        %v306 = vmul.f32 %v278, %v298
        %v307 = vmul.f32 %v279, %v294
        %v308 = vmul.f32 %v280, %v298
        %v309 = vmul.f32 %v281, %v294
        %v310 = vmul.f32 %v282, %v298
        %v311 = vmul.f32 %v283, %v294
        %v312 = vmul.f32 %v284, %v298
        %v313 = vmul.f32 %v285, %v294
        %v314 = vmul.f32 %v286, %v298
        %v315 = vmul.f32 %v287, %v294
        %v316 = vmul.f32 %v288, %v298
        %v317 = vld [vmem:[%s2] sm:$0x3]
        %v319 = vlaneseq
        %v320 = vshrl.u32 %v319, 7
        %v321 = vsub.s32 0, %v320
        %v322 = vrot.slane %v317, %v321
        %v323 = vlaneseq
        %v324 = vshrl.u32 %v323, 7
        %v325 = vsub.s32 1, %v324
        %v326 = vrot.slane %v317, %v325
        %v329 = vadd.f32 %v301, %v322
        %v330 = vadd.f32 %v302, %v326
        %v331 = vadd.f32 %v303, %v322
        %v332 = vadd.f32 %v304, %v326
        %v333 = vadd.f32 %v305, %v322
        %v334 = vadd.f32 %v306, %v326
        %v335 = vadd.f32 %v307, %v322
        %v336 = vadd.f32 %v308, %v326
        %v337 = vadd.f32 %v309, %v322
        %v338 = vadd.f32 %v310, %v326
        %v339 = vadd.f32 %v311, %v322
        %v340 = vadd.f32 %v312, %v326
        %v341 = vadd.f32 %v313, %v322
        %v342 = vadd.f32 %v314, %v326
        %v343 = vadd.f32 %v315, %v322
        %v344 = vadd.f32 %v316, %v326
        %v345 = vmax.f32 %v329, 0.0
        %v346 = vmax.f32 %v330, 0.0
        %v347 = vmax.f32 %v331, 0.0
        %v348 = vmax.f32 %v332, 0.0
        %v349 = vmax.f32 %v333, 0.0
        %v350 = vmax.f32 %v334, 0.0
        %v351 = vmax.f32 %v335, 0.0
        %v352 = vmax.f32 %v336, 0.0
        %v353 = vmax.f32 %v337, 0.0
        %v354 = vmax.f32 %v338, 0.0
        %v355 = vmax.f32 %v339, 0.0
        %v356 = vmax.f32 %v340, 0.0
        %v357 = vmax.f32 %v341, 0.0
        %v358 = vmax.f32 %v342, 0.0
        %v359 = vmax.f32 %v343, 0.0
        %v360 = vmax.f32 %v344, 0.0
        %v361 = vadd.f32 %v345, %v347
        %v362 = vadd.f32 %v346, %v348
        %v363 = vadd.f32 %v349, %v351
        %v364 = vadd.f32 %v350, %v352
        %v365 = vadd.f32 %v353, %v355
        %v366 = vadd.f32 %v354, %v356
        %v367 = vadd.f32 %v357, %v359
        %v368 = vadd.f32 %v358, %v360
        %v369 = vadd.f32 %v361, %v362
        %v370 = vadd.f32 %v363, %v364
        %v371 = vadd.f32 %v365, %v366
        %v372 = vadd.f32 %v367, %v368
        %v373 = vpack.c.bf16 %v370, %v369
        %v374 = vpack.c.bf16 %v372, %v371
        %v375 = vld [vmem:[#allocation7] sm:$0xf]
        %v376 = vld [vmem:[#allocation7 + $0x4] sm:$0xf]
        %v377 = vld [vmem:[#allocation7 + $0x8] sm:$0xf]
        %v378 = vld [vmem:[#allocation7 + $0xc] sm:$0xf]
        %v379 = vld [vmem:[#allocation7 + $0x10] sm:$0xf]
        %v380 = vld [vmem:[#allocation7 + $0x14] sm:$0xf]
        %v381 = vld [vmem:[#allocation7 + $0x18] sm:$0xf]
        %v382 = vld [vmem:[#allocation7 + $0x1c] sm:$0xf]
        %v383 = vld [vmem:[#allocation7 + $0x20] sm:$0xf]
        %v384 = vld [vmem:[#allocation7 + $0x24] sm:$0xf]
        %v385 = vld [vmem:[#allocation7 + $0x28] sm:$0xf]
        %v386 = vld [vmem:[#allocation7 + $0x2c] sm:$0xf]
        %v387 = vld [vmem:[#allocation7 + $0x30] sm:$0xf]
        %v388 = vld [vmem:[#allocation7 + $0x34] sm:$0xf]
        %v389 = vld [vmem:[#allocation7 + $0x38] sm:$0xf]
        %v390 = vld [vmem:[#allocation7 + $0x3c] sm:$0xf]
        %v407 = vunpack.c.l.b16 %v375
        %v408 = vunpack.c.l.b16 %v376
        %v409 = vunpack.c.l.b16 %v377
        %v410 = vunpack.c.l.b16 %v378
        %v411 = vunpack.c.l.b16 %v379
        %v412 = vunpack.c.l.b16 %v380
        %v413 = vunpack.c.l.b16 %v381
        %v414 = vunpack.c.l.b16 %v382
        %v415 = vunpack.c.l.b16 %v383
        %v416 = vunpack.c.l.b16 %v384
        %v417 = vunpack.c.l.b16 %v385
        %v418 = vunpack.c.l.b16 %v386
        %v419 = vunpack.c.l.b16 %v387
        %v420 = vunpack.c.l.b16 %v388
        %v421 = vunpack.c.l.b16 %v389
        %v422 = vunpack.c.l.b16 %v390
        %v423 = vpack.c.b16 %v408, %v407
        %v424 = vpack.c.b16 %v410, %v409
        %v425 = vpack.c.b16 %v412, %v411
        %v426 = vpack.c.b16 %v414, %v413
        %v427 = vpack.c.b16 %v416, %v415
        %v428 = vpack.c.b16 %v418, %v417
        %v429 = vpack.c.b16 %v420, %v419
        %v430 = vpack.c.b16 %v422, %v421
        %439 = vmatprep.subr.bf16.mxu0 0
        %440 = vmatpush1.bf16.msra.mxu0 %v430
        %441 = vmatprep.subr.bf16.mxu0 0
        %442 = vmatpush1.bf16.msra.mxu0 %v429
        %443 = vmatprep.subr.bf16.mxu0 0
        %444 = vmatpush1.bf16.msra.mxu0 %v428
        %445 = vmatprep.subr.bf16.mxu0 0
        %446 = vmatpush1.bf16.msra.mxu0 %v427
        %447 = vmatprep.subr.bf16.mxu0 0
        %448 = vmatpush1.bf16.msra.mxu0 %v426
        %449 = vmatprep.subr.bf16.mxu0 0
        %450 = vmatpush1.bf16.msra.mxu0 %v425
        %451 = vmatprep.subr.bf16.mxu0 0
        %452 = vmatpush1.bf16.msra.mxu0 %v424
        %453 = vmatprep.subr.bf16.mxu0 0
        %454 = vmatpush1.bf16.msra.mxu0 %v423
        %455 = vmatprep.subr.bf16.mxu0 0
        %456 = vmatpush2.bf16.msra.mxu0 0
        %457 = vmatprep.subr.bf16.mxu0 0
        %458 = vmatpush2.bf16.msra.mxu0 0
        %459 = vmatprep.subr.bf16.mxu0 0
        %460 = vmatpush2.bf16.msra.mxu0 0
        %461 = vmatprep.subr.bf16.mxu0 0
        %462 = vmatpush2.bf16.msra.mxu0 0
        %463 = vmatprep.subr.bf16.mxu0 0
        %464 = vmatpush2.bf16.msra.mxu0 0
        %465 = vmatprep.subr.bf16.mxu0 0
        %466 = vmatpush2.bf16.msra.mxu0 0
        %467 = vmatprep.subr.bf16.mxu0 0
        %468 = vmatpush2.bf16.msra.mxu0 0
        %469 = vmatprep.subr.bf16.mxu0 0
        %470 = vmatpush2.bf16.msra.mxu0 0
        %471 = vmatprep.mubr.bf16.mxu0 0
        %472 = vmatmul.mubr.bf16.gmra.mxu0 %v373
        %v473 = vpop.f32.mrf.mxu0
        %v474 = vadd.f32 0.0, %v473
        %v475 = vpop.f32.mrf.mxu0
        %v476 = vpop.f32.mrf.mxu0
        %v477 = vadd.f32 0.0, %v476
        %v478 = vpop.f32.mrf.mxu0
        %479 = vmatprep.mubr.bf16.mxu0 0
        %480 = vmatmul.mubr.bf16.gmra.mxu0 %v374
        %v481 = vpop.f32.mrf.mxu0
        %v482 = vadd.f32 0.0, %v481
        %v483 = vpop.f32.mrf.mxu0
        %v484 = vpop.f32.mrf.mxu0
        %v485 = vadd.f32 0.0, %v484
        %v486 = vpop.f32.mrf.mxu0
        %487 = vdwg.mxu0
        %488 = vst [vmem:[%s261] sm:$0xff] %v474
        %489 = vst [vmem:[%s261 + $0x8] sm:$0xff] %v477
        %490 = vst [vmem:[%s261 + $0x10] sm:$0xff] %v482
        %491 = vst [vmem:[%s261 + $0x18] sm:$0xff] %v485
        %s492 = sand.u32 %s135, 1
        %s493 = scalar_lea.sflag [#allocation4], %s492
        %s494 = sand.u32 %s135, 1
        %s495 = smul.addr %s494, 32
        %s496 = scalar_lea.vmem [#allocation8], %s495
        // Predicated region
        $region49: #{tpu_custom_call.1} parent=35 // pred_check
          %p497 = pneg %p145
        $region50: #{tpu_custom_call.1} parent=35 // pred_check_branch
          %499 = sbr.rel (%p497) target = $region52
        $region51: #{tpu_custom_call.1} parent=35 // pred_region
          %s500 = smul.u32 4, %s27
          %s502 = ssub.s32 512, 512
          %503 = vsyncadd %s493, %s502
          %s504 = smul.addr %s26, 8
          %s505 = sadd.s32 %s500, %s504
          %s506 = smul.addr %s505, 128
          %s507 = scalar_lea.hbm %s4, %s506
          %s508 = sshll.u32 %s496, 4
          %s509 = int_to_ptr.vmem [resolvable:$true] %s508
          %514 = dma.vmem_to_hbm [thread:$0]  %s509, 512, %s507, %s493, 128, 128, 8
        $region52: #{tpu_custom_call.1} parent=35 // pred_fallthru
          _
      $region36: #{tpu_custom_call.1} parent=5 // pred_fallthru
        _
      %p515 = scmp.le.s32.totalorder 2, %s17
      // Predicated region
      $region53: #{tpu_custom_call.1} parent=5 // pred_check
        %p516 = pneg %p515
      $region54: #{tpu_custom_call.1} parent=5 // pred_check_branch
        %518 = sbr.rel (%p516) target = $region56
      $region55: #{tpu_custom_call.1} parent=5 // pred_region
        %s519 = ssub.s32 %s17, 2
        // Predicated region
        $region57: #{tpu_custom_call.1} parent=55 // pred_check
          %p520 = pneg %p151
        $region58: #{tpu_custom_call.1} parent=55 // pred_check_branch
          %522 = sbr.rel (%p520) target = $region60
        $region59: #{tpu_custom_call.1} parent=55 // pred_region
          %s523 = sand.u32 %s136, 1
          %s524 = scalar_lea.sflag [#allocation4], %s523
          %s525 = sand.u32 %s136, 1
          %s526 = smul.addr %s525, 32
          %s527 = scalar_lea.vmem [#allocation8], %s526
          %528 = dma.done %s524, 512
        $region60: #{tpu_custom_call.1} parent=55 // pred_fallthru
          _
      $region56: #{tpu_custom_call.1} parent=5 // pred_fallthru
        _
    $region6: #{tpu_custom_call.1} parent=1 // loop_footer
      %s21 = sadd.s32 1, %s17
    $region7: #{tpu_custom_call.1} parent=1 // loop_footer_branch
      %16 = sbr.rel target = $region3
    $region8: #{tpu_custom_call.1} parent=1 // loop_exit
      _
    %529 = vsyncpa [#allocation3], 1
    %s530 = scalar_lea.sflag [#allocation3], 1
    %531 = vsyncpa %s530, 1
    %532 = vsyncpa [#allocation6], 1
    %533 = vsyncpa [#allocation4], 1
    %s534 = scalar_lea.sflag [#allocation4], 1
    %535 = vsyncpa %s534, 1

// kernel: tpu_custom_call.1
$region0: #{tpu_custom_call.1}
  #allocation0 [shape = 'u32[]', space=smem, size = 0x4, offset = 0x4, fixed_abs, tag = 'smem constant byte address 0x4 - core index']
  #allocation1 [shape = 'u32[144,128]{1,0:T(1,128)}', space=vmem, size = 0x12000, scoped, tag = 'internal scratch']
  %s0 = inlined_call_operand.hbm [shape: bf16[2,16,8,256], index: 0, kind: input, shape index: {}]
  %s1 = inlined_call_operand.hbm [shape: f32[1,256], index: 1, kind: input, shape index: {}]
  %s2 = inlined_call_operand.vmem [shape: f32[1,256], index: 2, kind: input, shape index: {}]
  %s3 = inlined_call_operand.hbm [shape: bf16[128,128], index: 3, kind: input, shape index: {}]
  %s4 = inlined_call_operand.hbm [shape: f32[2,8,8,128], index: 4, kind: output, shape index: {}]
  %s5 = sld [smem:[#allocation0]]
  $region61: #{tpu_custom_call.1} parent=0
    _
  %s7 = ssub.s32 1, %s5
  %s8 = scalar_select 0, %s7, %s5
  $region1: #{tpu_custom_call.1} parent=0
    #allocation2 [shape = 'u8[65536]{0}', space=vmem, size = 0x10000, scoped, tag = 'input window, operand 0']
    #allocation3 [shape = 's32[2]{0}', space=sflag, size = 0x8, scoped, tag = 'scoped memory for tpu_custom_call.1']
    #allocation4 [shape = 's32[2]{0}', space=sflag, size = 0x8, scoped, tag = 'scoped memory for tpu_custom_call.1']
    #allocation5 [shape = 'u8[1024]{0}', space=vmem, size = 0x400, scoped, tag = 'input window, operand 1, single buffered']
    #allocation6 [shape = 's32[1]{0}', space=sflag, size = 0x4, scoped, tag = 'scoped memory for tpu_custom_call.1']
    #allocation7 [shape = 'u8[32768]{0}', space=vmem, size = 0x8000, scoped, tag = 'input window, operand 3, single buffered']
    #allocation8 [shape = 'u8[32768]{0}', space=vmem, size = 0x8000, scoped, tag = 'output window, operand 0']
    %9 = vsyncpa [#allocation3], 0
    %s10 = scalar_lea.sflag [#allocation3], 1
    %11 = vsyncpa %s10, 0
    %12 = vsyncpa [#allocation6], 0
    %13 = vsyncpa [#allocation4], 0
    %s14 = scalar_lea.sflag [#allocation4], 1
    %15 = vsyncpa %s14, 0
    loop: start=0, step=1, limit=6
    $region2: #{tpu_custom_call.1} parent=1 // loop_pre_header
      _
    $region3: #{tpu_custom_call.1} parent=1 // loop_header
      %s17 = sphi 0, %s21
      %p18 = scmp.ge.s32.totalorder %s17, 6
      %s24 = sphi 0, %s36
      %s25 = sphi 0, %s32
      %s26 = sphi 0, %s24
      %s27 = sphi 0, %s25
      %s28 = sphi 0, %s26
      %s29 = sphi 0, %s27
      %s41 = sphi 0, %s43
      %s44 = sphi 0, %s41
      %s45 = sphi 0, %s44
      %s61 = sphi 0, %s45
      %s65 = sphi 0, %s65
      %s67 = sphi 0, %s65
      %s68 = sphi 0, %s67
      %s82 = sphi 0, %s68
      %s86 = sphi 0, %s86
      %s88 = sphi 0, %s86
      %s89 = sphi 0, %s88
      %s103 = sphi 0, %s89
      %s107 = sphi 0, %s107
      %s109 = sphi 0, %s107
      %s110 = sphi 0, %s109
      %s124 = sphi 0, %s110
      %s132 = sphi 0, %s134
      %s135 = sphi 0, %s132
      %s136 = sphi 0, %s135
      %s152 = sphi 0, %s136
    $region4: #{tpu_custom_call.1} parent=1 // loop_header_branch
      %20 = sbr.rel (%p18) target = $region8
    $region5: #{tpu_custom_call.1} parent=1 // loop_body
      %s22 = ssub.s32 %s17, 1
      %s23 = ssub.s32 %s17, 2
      %s30 = sadd.s32 1, %s25
      %p31 = scmp.ge.s32.totalorder %s30, 2
      %s32 = scalar_select %p31, 0, %s30
      %s33 = sadd.s32 1, %s24
      %s34 = scalar_select %p31, %s33, %s24
      %p35 = scmp.ge.s32.totalorder %s34, 2
      %s36 = scalar_select %p35, 0, %s34
      %s37 = ssub.s32 %s24, %s36
      %s38 = ssub.s32 %s25, %s32
      %s39 = sor.u32 %s37, %s38
      %p40 = scmp.eq.s32.totalorder %s39, 0
      %s42 = sadd.s32 %s41, 1
      %s43 = scalar_select %p40, %s41, %s42
      %p46 = pneg %p40
      %p47 = scmp.eq.s32.totalorder %s17, 3
      %p48 = por %p46, %p47
      %p49 = scmp.ne.s32.totalorder %s41, %s44
      %p50 = scmp.eq.s32.totalorder %s17, 0
      %p51 = por %p49, %p50
      %p52 = scmp.ne.s32.totalorder %s41, %s44
      %p53 = scmp.eq.s32.totalorder %s22, 3
      %p54 = por %p52, %p53
      %p55 = scmp.ne.s32.totalorder %s44, %s45
      %p56 = scmp.eq.s32.totalorder %s22, 0
      %p57 = por %p55, %p56
      %p58 = scmp.ne.s32.totalorder %s44, %s45
      %p59 = scmp.eq.s32.totalorder %s23, 3
      %p60 = por %p58, %p59
      %p62 = scmp.ne.s32.totalorder %s45, %s61
      %p63 = scmp.eq.s32.totalorder %s23, 0
      %p64 = por %p62, %p63
      %s66 = sadd.s32 %s65, 1
      %p69 = scmp.eq.s32.totalorder %s17, 3
      %p70 = scmp.ne.s32.totalorder %s65, %s67
      %p71 = scmp.eq.s32.totalorder %s17, 0
      %p72 = por %p70, %p71
      %p73 = scmp.ne.s32.totalorder %s65, %s67
      %p74 = scmp.eq.s32.totalorder %s22, 3
      %p75 = por %p73, %p74
      %p76 = scmp.ne.s32.totalorder %s67, %s68
      %p77 = scmp.eq.s32.totalorder %s22, 0
      %p78 = por %p76, %p77
      %p79 = scmp.ne.s32.totalorder %s67, %s68
      %p80 = scmp.eq.s32.totalorder %s23, 3
      %p81 = por %p79, %p80
      %p83 = scmp.ne.s32.totalorder %s68, %s82
      %p84 = scmp.eq.s32.totalorder %s23, 0
      %p85 = por %p83, %p84
      %s87 = sadd.s32 %s86, 1
      %p90 = scmp.eq.s32.totalorder %s17, 3
      %p91 = scmp.ne.s32.totalorder %s86, %s88
      %p92 = scmp.eq.s32.totalorder %s17, 0
      %p93 = por %p91, %p92
      %p94 = scmp.ne.s32.totalorder %s86, %s88
      %p95 = scmp.eq.s32.totalorder %s22, 3
      %p96 = por %p94, %p95
      %p97 = scmp.ne.s32.totalorder %s88, %s89
      %p98 = scmp.eq.s32.totalorder %s22, 0
      %p99 = por %p97, %p98
      %p100 = scmp.ne.s32.totalorder %s88, %s89
      %p101 = scmp.eq.s32.totalorder %s23, 3
      %p102 = por %p100, %p101
      %p104 = scmp.ne.s32.totalorder %s89, %s103
      %p105 = scmp.eq.s32.totalorder %s23, 0
      %p106 = por %p104, %p105
      %s108 = sadd.s32 %s107, 1
      %p111 = scmp.eq.s32.totalorder %s17, 3
      %p112 = scmp.ne.s32.totalorder %s107, %s109
      %p113 = scmp.eq.s32.totalorder %s17, 0
      %p114 = por %p112, %p113
      %p115 = scmp.ne.s32.totalorder %s107, %s109
      %p116 = scmp.eq.s32.totalorder %s22, 3
      %p117 = por %p115, %p116
      %p118 = scmp.ne.s32.totalorder %s109, %s110
      %p119 = scmp.eq.s32.totalorder %s22, 0
      %p120 = por %p118, %p119
      %p121 = scmp.ne.s32.totalorder %s109, %s110
      %p122 = scmp.eq.s32.totalorder %s23, 3
      %p123 = por %p121, %p122
      %p125 = scmp.ne.s32.totalorder %s110, %s124
      %p126 = scmp.eq.s32.totalorder %s23, 0
      %p127 = por %p125, %p126
      %s128 = ssub.s32 %s24, %s36
      %s129 = ssub.s32 %s25, %s32
      %s130 = sor.u32 %s128, %s129
      %p131 = scmp.eq.s32.totalorder %s130, 0
      %s133 = sadd.s32 %s132, 1
      %s134 = scalar_select %p131, %s132, %s133
      %p137 = pneg %p131
      %p138 = scmp.eq.s32.totalorder %s17, 3
      %p139 = por %p137, %p138
      %p140 = scmp.ne.s32.totalorder %s132, %s135
      %p141 = scmp.eq.s32.totalorder %s17, 0
      %p142 = por %p140, %p141
      %p143 = scmp.ne.s32.totalorder %s132, %s135
      %p144 = scmp.eq.s32.totalorder %s22, 3
      %p145 = por %p143, %p144
      %p146 = scmp.ne.s32.totalorder %s135, %s136
      %p147 = scmp.eq.s32.totalorder %s22, 0
      %p148 = por %p146, %p147
      %p149 = scmp.ne.s32.totalorder %s135, %s136
      %p150 = scmp.eq.s32.totalorder %s23, 3
      %p151 = por %p149, %p150
      %p153 = scmp.ne.s32.totalorder %s136, %s152
      %p154 = scmp.eq.s32.totalorder %s23, 0
      %p155 = por %p153, %p154
      %p156 = scmp.le.s32.totalorder 1, %s17
      %p157 = scmp.lt.s32.totalorder %s17, 5
      %p158 = pnand %p156, %p157
      %p159 = pneg %p158
      // Predicated region
      $region9: #{tpu_custom_call.1} parent=5 // pred_check
        _
      $region10: #{tpu_custom_call.1} parent=5 // pred_check_branch
        %161 = sbr.rel (%p158) target = $region12
      $region11: #{tpu_custom_call.1} parent=5 // pred_region
        %s162 = ssub.s32 %s17, 1
        // Predicated region
        $region13: #{tpu_custom_call.1} parent=11 // pred_check
          %p163 = pneg %p78
        $region14: #{tpu_custom_call.1} parent=11 // pred_check_branch
          %165 = sbr.rel (%p163) target = $region16
        $region15: #{tpu_custom_call.1} parent=11 // pred_region
          %s167 = ssub.s32 32, 32
          %168 = vsyncadd [#allocation6], %s167
          %s170 = sshll.u32 [#allocation5], 4
          %s171 = int_to_ptr.vmem [resolvable:$true] %s170
          %173 = dma.hbm_to_vmem [thread:$0]  %s1, 32, %s171, [#allocation6]
        $region16: #{tpu_custom_call.1} parent=11 // pred_fallthru
          _
        // Predicated region
        $region17: #{tpu_custom_call.1} parent=11 // pred_check
          %p174 = pneg %p99
        $region18: #{tpu_custom_call.1} parent=11 // pred_check_branch
          %176 = sbr.rel (%p174) target = $region20
        $region19: #{tpu_custom_call.1} parent=11 // pred_region
          _
        $region20: #{tpu_custom_call.1} parent=11 // pred_fallthru
          _
        // Predicated region
        $region21: #{tpu_custom_call.1} parent=11 // pred_check
          %p177 = pneg %p120
        $region22: #{tpu_custom_call.1} parent=11 // pred_check_branch
          %179 = sbr.rel (%p177) target = $region24
        $region23: #{tpu_custom_call.1} parent=11 // pred_region
          %s181 = ssub.s32 1024, 1024
          %182 = vsyncadd [#allocation6], %s181
          %s183 = sshll.u32 [#allocation7], 4
          %s184 = int_to_ptr.vmem [resolvable:$true] %s183
          %189 = dma.hbm_to_vmem [thread:$0]  %s3, 1024, %s184, [#allocation6], 64, 64, 4
        $region24: #{tpu_custom_call.1} parent=11 // pred_fallthru
          _
      $region12: #{tpu_custom_call.1} parent=5 // pred_fallthru
        _
      %p190 = scmp.lt.s32.totalorder %s17, 4
      // Predicated region
      $region25: #{tpu_custom_call.1} parent=5 // pred_check
        %p191 = pneg %p190
      $region26: #{tpu_custom_call.1} parent=5 // pred_check_branch
        %193 = sbr.rel (%p191) target = $region28
      $region27: #{tpu_custom_call.1} parent=5 // pred_region
        // Predicated region
        $region29: #{tpu_custom_call.1} parent=27 // pred_check
          %p194 = pneg %p51
        $region30: #{tpu_custom_call.1} parent=27 // pred_check_branch
          %196 = sbr.rel (%p194) target = $region32
        $region31: #{tpu_custom_call.1} parent=27 // pred_region
          %s197 = sand.u32 %s41, 1
          %s198 = scalar_lea.sflag [#allocation3], %s197
          %s199 = sand.u32 %s41, 1
          %s200 = smul.addr %s199, 64
          %s201 = scalar_lea.vmem [#allocation2], %s200
          %s202 = smul.u32 8, %s25
          %s204 = ssub.s32 1024, 1024
          %205 = vsyncadd %s198, %s204
          %s206 = smul.addr %s202, 2
          %s207 = smul.addr %s24, 32
          %s208 = sadd.s32 %s206, %s207
          %s209 = smul.addr %s208, 64
          %s210 = scalar_lea.hbm %s0, %s209
          %s211 = sshll.u32 %s201, 4
          %s212 = int_to_ptr.vmem [resolvable:$true] %s211
          %217 = dma.hbm_to_vmem [thread:$0]  %s210, 1024, %s212, %s198, 128, 128, 8
        $region32: #{tpu_custom_call.1} parent=27 // pred_fallthru
          _
      $region28: #{tpu_custom_call.1} parent=5 // pred_fallthru
        _
      %p218 = scmp.le.s32.totalorder 1, %s17
      %p219 = scmp.lt.s32.totalorder %s17, 5
      %p220 = pnand %p218, %p219
      %p221 = pneg %p220
      // Predicated region
      $region33: #{tpu_custom_call.1} parent=5 // pred_check
        _
      $region34: #{tpu_custom_call.1} parent=5 // pred_check_branch
        %223 = sbr.rel (%p220) target = $region36
      $region35: #{tpu_custom_call.1} parent=5 // pred_region
        %s224 = ssub.s32 %s17, 1
        %s225 = sand.u32 %s44, 1
        %s226 = scalar_lea.sflag [#allocation3], %s225
        %s227 = sand.u32 %s44, 1
        %s228 = smul.addr %s227, 64
        %s229 = scalar_lea.vmem [#allocation2], %s228
        // Predicated region
        $region37: #{tpu_custom_call.1} parent=35 // pred_check
          %p230 = pneg %p57
        $region38: #{tpu_custom_call.1} parent=35 // pred_check_branch
          %232 = sbr.rel (%p230) target = $region40
        $region39: #{tpu_custom_call.1} parent=35 // pred_region
          %233 = dma.done %s226, 1024
        $region40: #{tpu_custom_call.1} parent=35 // pred_fallthru
          _
        // Predicated region
        $region41: #{tpu_custom_call.1} parent=35 // pred_check
          %p234 = pneg %p78
        $region42: #{tpu_custom_call.1} parent=35 // pred_check_branch
          %236 = sbr.rel (%p234) target = $region44
        $region43: #{tpu_custom_call.1} parent=35 // pred_region
          %237 = dma.done [#allocation6], 32
        $region44: #{tpu_custom_call.1} parent=35 // pred_fallthru
          _
        // Predicated region
        $region45: #{tpu_custom_call.1} parent=35 // pred_check
          %p238 = pneg %p120
        $region46: #{tpu_custom_call.1} parent=35 // pred_check_branch
          %240 = sbr.rel (%p238) target = $region48
        $region47: #{tpu_custom_call.1} parent=35 // pred_region
          %241 = dma.done [#allocation6], 1024
        $region48: #{tpu_custom_call.1} parent=35 // pred_fallthru
          _
        %s242 = sand.u32 %s44, 1
        %s243 = scalar_lea.sflag [#allocation3], %s242
        %s244 = sand.u32 %s44, 1
        %s245 = smul.addr %s244, 64
        %s246 = scalar_lea.vmem [#allocation2], %s245
        %p247 = pneg %p57
        %p248 = pneg %p54
        %p249 = pneg %p78
        %p250 = pneg %p75
        %p251 = pneg %p99
        %p252 = pneg %p96
        %p253 = pneg %p120
        %p254 = pneg %p117
        %p255 = pneg %p148
        %p256 = pneg %p145
        %s257 = sand.u32 %s135, 1
        %s258 = scalar_lea.sflag [#allocation4], %s257
        %s259 = sand.u32 %s135, 1
        %s260 = smul.addr %s259, 32
        %s261 = scalar_lea.vmem [#allocation8], %s260
        %s262 = smul.u32 8, %s27
        %s263 = smul.u32 4, %s27
        %v265 = vld [vmem:[%s229] sm:$0xff]
        %v266 = vld [vmem:[%s229 + $0x8] sm:$0xff]
        %v267 = vld [vmem:[%s229 + $0x10] sm:$0xff]
        %v268 = vld [vmem:[%s229 + $0x18] sm:$0xff]
        %v269 = vld [vmem:[%s229 + $0x20] sm:$0xff]
        %v270 = vld [vmem:[%s229 + $0x28] sm:$0xff]
        %v271 = vld [vmem:[%s229 + $0x30] sm:$0xff]
        %v272 = vld [vmem:[%s229 + $0x38] sm:$0xff]
        %v273 = vunpack.c.l.bf16 %v265
        %v274 = vunpack.c.h.bf16 %v265
        %v275 = vunpack.c.l.bf16 %v266
        %v276 = vunpack.c.h.bf16 %v266
        %v277 = vunpack.c.l.bf16 %v267
        %v278 = vunpack.c.h.bf16 %v267
        %v279 = vunpack.c.l.bf16 %v268
        %v280 = vunpack.c.h.bf16 %v268
        %v281 = vunpack.c.l.bf16 %v269
        %v282 = vunpack.c.h.bf16 %v269
        %v283 = vunpack.c.l.bf16 %v270
        %v284 = vunpack.c.h.bf16 %v270
        %v285 = vunpack.c.l.bf16 %v271
        %v286 = vunpack.c.h.bf16 %v271
        %v287 = vunpack.c.l.bf16 %v272
        %v288 = vunpack.c.h.bf16 %v272
        %v289 = vld [vmem:[#allocation5] sm:$0x3]
        %v291 = vlaneseq
        %v292 = vshrl.u32 %v291, 7
        %v293 = vsub.s32 0, %v292
        %v294 = vrot.slane %v289, %v293
        %v295 = vlaneseq
        %v296 = vshrl.u32 %v295, 7
        %v297 = vsub.s32 1, %v296
        %v298 = vrot.slane %v289, %v297
        %v301 = vmul.f32 %v273, %v294
        %v302 = vmul.f32 %v274, %v298
        %v303 = vmul.f32 %v275, %v294
        %v304 = vmul.f32 %v276, %v298
        %v305 = vmul.f32 %v277, %v294
        %v306 = vmul.f32 %v278, %v298
        %v307 = vmul.f32 %v279, %v294
        %v308 = vmul.f32 %v280, %v298
        %v309 = vmul.f32 %v281, %v294
        %v310 = vmul.f32 %v282, %v298
        %v311 = vmul.f32 %v283, %v294
        %v312 = vmul.f32 %v284, %v298
        %v313 = vmul.f32 %v285, %v294
        %v314 = vmul.f32 %v286, %v298
        %v315 = vmul.f32 %v287, %v294
        %v316 = vmul.f32 %v288, %v298
        %v317 = vld [vmem:[%s2] sm:$0x3]
        %v319 = vlaneseq
        %v320 = vshrl.u32 %v319, 7
        %v321 = vsub.s32 0, %v320
        %v322 = vrot.slane %v317, %v321
        %v323 = vlaneseq
        %v324 = vshrl.u32 %v323, 7
        %v325 = vsub.s32 1, %v324
        %v326 = vrot.slane %v317, %v325
        %v329 = vadd.f32 %v301, %v322
        %v330 = vadd.f32 %v302, %v326
        %v331 = vadd.f32 %v303, %v322
        %v332 = vadd.f32 %v304, %v326
        %v333 = vadd.f32 %v305, %v322
        %v334 = vadd.f32 %v306, %v326
        %v335 = vadd.f32 %v307, %v322
        %v336 = vadd.f32 %v308, %v326
        %v337 = vadd.f32 %v309, %v322
        %v338 = vadd.f32 %v310, %v326
        %v339 = vadd.f32 %v311, %v322
        %v340 = vadd.f32 %v312, %v326
        %v341 = vadd.f32 %v313, %v322
        %v342 = vadd.f32 %v314, %v326
        %v343 = vadd.f32 %v315, %v322
        %v344 = vadd.f32 %v316, %v326
        %v345 = vmax.f32 %v329, 0.0
        %v346 = vmax.f32 %v330, 0.0
        %v347 = vmax.f32 %v331, 0.0
        %v348 = vmax.f32 %v332, 0.0
        %v349 = vmax.f32 %v333, 0.0
        %v350 = vmax.f32 %v334, 0.0
        %v351 = vmax.f32 %v335, 0.0
        %v352 = vmax.f32 %v336, 0.0
        %v353 = vmax.f32 %v337, 0.0
        %v354 = vmax.f32 %v338, 0.0
        %v355 = vmax.f32 %v339, 0.0
        %v356 = vmax.f32 %v340, 0.0
        %v357 = vmax.f32 %v341, 0.0
        %v358 = vmax.f32 %v342, 0.0
        %v359 = vmax.f32 %v343, 0.0
        %v360 = vmax.f32 %v344, 0.0
        %v361 = vadd.f32 %v345, %v347
        %v362 = vadd.f32 %v346, %v348
        %v363 = vadd.f32 %v349, %v351
        %v364 = vadd.f32 %v350, %v352
        %v365 = vadd.f32 %v353, %v355
        %v366 = vadd.f32 %v354, %v356
        %v367 = vadd.f32 %v357, %v359
        %v368 = vadd.f32 %v358, %v360
        %v369 = vadd.f32 %v361, %v362
        %v370 = vadd.f32 %v363, %v364
        %v371 = vadd.f32 %v365, %v366
        %v372 = vadd.f32 %v367, %v368
        %v373 = vpack.c.bf16 %v370, %v369
        %v374 = vpack.c.bf16 %v372, %v371
        %v375 = vld [vmem:[#allocation7] sm:$0xf]
        %v376 = vld [vmem:[#allocation7 + $0x4] sm:$0xf]
        %v377 = vld [vmem:[#allocation7 + $0x8] sm:$0xf]
        %v378 = vld [vmem:[#allocation7 + $0xc] sm:$0xf]
        %v379 = vld [vmem:[#allocation7 + $0x10] sm:$0xf]
        %v380 = vld [vmem:[#allocation7 + $0x14] sm:$0xf]
        %v381 = vld [vmem:[#allocation7 + $0x18] sm:$0xf]
        %v382 = vld [vmem:[#allocation7 + $0x1c] sm:$0xf]
        %v383 = vld [vmem:[#allocation7 + $0x20] sm:$0xf]
        %v384 = vld [vmem:[#allocation7 + $0x24] sm:$0xf]
        %v385 = vld [vmem:[#allocation7 + $0x28] sm:$0xf]
        %v386 = vld [vmem:[#allocation7 + $0x2c] sm:$0xf]
        %v387 = vld [vmem:[#allocation7 + $0x30] sm:$0xf]
        %v388 = vld [vmem:[#allocation7 + $0x34] sm:$0xf]
        %v389 = vld [vmem:[#allocation7 + $0x38] sm:$0xf]
        %v390 = vld [vmem:[#allocation7 + $0x3c] sm:$0xf]
        %v407 = vunpack.c.l.b16 %v375
        %v408 = vunpack.c.l.b16 %v376
        %v409 = vunpack.c.l.b16 %v377
        %v410 = vunpack.c.l.b16 %v378
        %v411 = vunpack.c.l.b16 %v379
        %v412 = vunpack.c.l.b16 %v380
        %v413 = vunpack.c.l.b16 %v381
        %v414 = vunpack.c.l.b16 %v382
        %v415 = vunpack.c.l.b16 %v383
        %v416 = vunpack.c.l.b16 %v384
        %v417 = vunpack.c.l.b16 %v385
        %v418 = vunpack.c.l.b16 %v386
        %v419 = vunpack.c.l.b16 %v387
        %v420 = vunpack.c.l.b16 %v388
        %v421 = vunpack.c.l.b16 %v389
        %v422 = vunpack.c.l.b16 %v390
        %v423 = vpack.c.b16 %v408, %v407
        %v424 = vpack.c.b16 %v410, %v409
        %v425 = vpack.c.b16 %v412, %v411
        %v426 = vpack.c.b16 %v414, %v413
        %v427 = vpack.c.b16 %v416, %v415
        %v428 = vpack.c.b16 %v418, %v417
        %v429 = vpack.c.b16 %v420, %v419
        %v430 = vpack.c.b16 %v422, %v421
        %439 = vmatprep.subr.bf16.mxu0 0
        %440 = vmatpush1.bf16.msra.mxu0 %v430
        %441 = vmatprep.subr.bf16.mxu0 0
        %442 = vmatpush1.bf16.msra.mxu0 %v429
        %443 = vmatprep.subr.bf16.mxu0 0
        %444 = vmatpush1.bf16.msra.mxu0 %v428
        %445 = vmatprep.subr.bf16.mxu0 0
        %446 = vmatpush1.bf16.msra.mxu0 %v427
        %447 = vmatprep.subr.bf16.mxu0 0
        %448 = vmatpush1.bf16.msra.mxu0 %v426
        %449 = vmatprep.subr.bf16.mxu0 0
        %450 = vmatpush1.bf16.msra.mxu0 %v425
        %451 = vmatprep.subr.bf16.mxu0 0
        %452 = vmatpush1.bf16.msra.mxu0 %v424
        %453 = vmatprep.subr.bf16.mxu0 0
        %454 = vmatpush1.bf16.msra.mxu0 %v423
        %455 = vmatprep.subr.bf16.mxu0 0
        %456 = vmatpush2.bf16.msra.mxu0 0
        %457 = vmatprep.subr.bf16.mxu0 0
        %458 = vmatpush2.bf16.msra.mxu0 0
        %459 = vmatprep.subr.bf16.mxu0 0
        %460 = vmatpush2.bf16.msra.mxu0 0
        %461 = vmatprep.subr.bf16.mxu0 0
        %462 = vmatpush2.bf16.msra.mxu0 0
        %463 = vmatprep.subr.bf16.mxu0 0
        %464 = vmatpush2.bf16.msra.mxu0 0
        %465 = vmatprep.subr.bf16.mxu0 0
        %466 = vmatpush2.bf16.msra.mxu0 0
        %467 = vmatprep.subr.bf16.mxu0 0
        %468 = vmatpush2.bf16.msra.mxu0 0
        %469 = vmatprep.subr.bf16.mxu0 0
        %470 = vmatpush2.bf16.msra.mxu0 0
        %471 = vmatprep.mubr.bf16.mxu0 0
        %472 = vmatmul.mubr.bf16.gmra.mxu0 %v373
        %v473 = vpop.f32.mrf.mxu0
        %v474 = vadd.f32 0.0, %v473
        %v475 = vpop.f32.mrf.mxu0
        %v476 = vpop.f32.mrf.mxu0
        %v477 = vadd.f32 0.0, %v476
        %v478 = vpop.f32.mrf.mxu0
        %479 = vmatprep.mubr.bf16.mxu0 0
        %480 = vmatmul.mubr.bf16.gmra.mxu0 %v374
        %v481 = vpop.f32.mrf.mxu0
        %v482 = vadd.f32 0.0, %v481
        %v483 = vpop.f32.mrf.mxu0
        %v484 = vpop.f32.mrf.mxu0
        %v485 = vadd.f32 0.0, %v484
        %v486 = vpop.f32.mrf.mxu0
        %487 = vdwg.mxu0
        %488 = vst [vmem:[%s261] sm:$0xff] %v474
        %489 = vst [vmem:[%s261 + $0x8] sm:$0xff] %v477
        %490 = vst [vmem:[%s261 + $0x10] sm:$0xff] %v482
        %491 = vst [vmem:[%s261 + $0x18] sm:$0xff] %v485
        %s492 = sand.u32 %s135, 1
        %s493 = scalar_lea.sflag [#allocation4], %s492
        %s494 = sand.u32 %s135, 1
        %s495 = smul.addr %s494, 32
        %s496 = scalar_lea.vmem [#allocation8], %s495
        // Predicated region
        $region49: #{tpu_custom_call.1} parent=35 // pred_check
          %p497 = pneg %p145
        $region50: #{tpu_custom_call.1} parent=35 // pred_check_branch
          %499 = sbr.rel (%p497) target = $region52
        $region51: #{tpu_custom_call.1} parent=35 // pred_region
          %s500 = smul.u32 4, %s27
          %s502 = ssub.s32 512, 512
          %503 = vsyncadd %s493, %s502
          %s504 = smul.addr %s26, 8
          %s505 = sadd.s32 %s500, %s504
          %s506 = smul.addr %s505, 128
          %s507 = scalar_lea.hbm %s4, %s506
          %s508 = sshll.u32 %s496, 4
          %s509 = int_to_ptr.vmem [resolvable:$true] %s508
          %514 = dma.vmem_to_hbm [thread:$0]  %s509, 512, %s507, %s493, 128, 128, 8
        $region52: #{tpu_custom_call.1} parent=35 // pred_fallthru
          _
      $region36: #{tpu_custom_call.1} parent=5 // pred_fallthru
        _
      %p515 = scmp.le.s32.totalorder 2, %s17
      // Predicated region
      $region53: #{tpu_custom_call.1} parent=5 // pred_check
        %p516 = pneg %p515
      $region54: #{tpu_custom_call.1} parent=5 // pred_check_branch
        %518 = sbr.rel (%p516) target = $region56
      $region55: #{tpu_custom_call.1} parent=5 // pred_region
        %s519 = ssub.s32 %s17, 2
        // Predicated region
        $region57: #{tpu_custom_call.1} parent=55 // pred_check
          %p520 = pneg %p151
        $region58: #{tpu_custom_call.1} parent=55 // pred_check_branch
          %522 = sbr.rel (%p520) target = $region60
        $region59: #{tpu_custom_call.1} parent=55 // pred_region
          %s523 = sand.u32 %s136, 1
          %s524 = scalar_lea.sflag [#allocation4], %s523
          %s525 = sand.u32 %s136, 1
          %s526 = smul.addr %s525, 32
          %s527 = scalar_lea.vmem [#allocation8], %s526
          %528 = dma.done %s524, 512
        $region60: #{tpu_custom_call.1} parent=55 // pred_fallthru
          _
      $region56: #{tpu_custom_call.1} parent=5 // pred_fallthru
        _
    $region6: #{tpu_custom_call.1} parent=1 // loop_footer
      %s21 = sadd.s32 1, %s17
    $region7: #{tpu_custom_call.1} parent=1 // loop_footer_branch
      %16 = sbr.rel target = $region3
    $region8: #{tpu_custom_call.1} parent=1 // loop_exit
      _
    %529 = vsyncpa [#allocation3], 1
    %s530 = scalar_lea.sflag [#allocation3], 1
    %531 = vsyncpa %s530, 1
    %532 = vsyncpa [#allocation6], 1
    %533 = vsyncpa [#allocation4], 1
    %s534 = scalar_lea.sflag [#allocation4], 1
    %535 = vsyncpa %s534, 1

</llo_original>
